<compile_context>
chip_gen: v7x
topology: tpu7x:2x2x1
jax: 0.10.0
libtpu: 0.0.40
codegen_flags: <defaults>
</compile_context>

<pallas_src>
import functools

import jax
import jax.numpy as jnp
from jax.experimental import pallas as pl
from jax.experimental.pallas import tpu as pltpu

_INV_SQRT2 = 0.7071067811865476


def _tpu_vmem_bytes():
    try:
        info = pltpu.get_tpu_info()
        return int(getattr(info, "vmem_capacity_bytes", 64 * 1024 * 1024))
    except Exception:  # conservative fallback (v7x-sized VMEM)
        return 64 * 1024 * 1024


_VMEM_BYTES = _tpu_vmem_bytes()
# Leave ~25% headroom for Mosaic-internal scratch / semaphores:
#   128 MiB parts (v5e/v6e) -> 96 MiB scoped limit; 64 MiB parts (v7x) -> 48 MiB.
_VMEM_LIMIT = int(_VMEM_BYTES * 3 // 4)
# Weight-stream depth: 3 on 128 MiB parts, 2 on 64 MiB parts (saves D_in*to*2B).
_WEIGHT_BUFFERS = 3 if _VMEM_BYTES >= 96 * 1024 * 1024 else 2


def _moe_kernel(x_ref, wg_ref, bg_ref, we_ref, be_ref, o_ref, acc_ref, gates_ref):
    e = pl.program_id(2)
    n_experts_grid = pl.num_programs(2)

    # Start of the expert reduction for this (token tile, output tile):
    # zero the accumulator and (re)compute the gate block for this token tile.
    @pl.when(e == 0)
    def _():
        logits = (
            jnp.dot(x_ref[...], wg_ref[...], preferred_element_type=jnp.float32)
            + bg_ref[...]
        )
        m = jnp.max(logits, axis=-1, keepdims=True)
        p = jnp.exp(logits - m)
        # Fold GELU's 0.5 into the gate so the per-expert epilogue saves a
        # full-tile VPU multiply.
        gates_ref[...] = 0.5 * p / jnp.sum(p, axis=-1, keepdims=True)
        acc_ref[...] = jnp.zeros_like(acc_ref)

    # Expert e on this (tn, to) tile: GELU(x @ W_e + b_e).  bf16 operands on the
    # MXU with f32 accumulation; exact-erf GELU matches torch.nn.GELU's default.
    h = (
        jnp.dot(x_ref[...], we_ref[...], preferred_element_type=jnp.float32)
        + be_ref[pl.ds(e, 1), :]
    )
    act = h * (1.0 + jax.lax.erf(h * _INV_SQRT2))  # 0.5 already folded into gate

    # Extract gate column e as a (tn, 1) lane-broadcastable column via a masked
    # lane-reduce (cheap VPU/XLU work, hidden under the expert matmul; avoids a
    # dynamic lane slice).
    tn_blk, n_e = gates_ref.shape
    lane = jax.lax.broadcasted_iota(jnp.int32, (tn_blk, n_e), 1)
    g_col = jnp.sum(
        jnp.where(lane == e, gates_ref[...], 0.0), axis=-1, keepdims=True
    )

    acc_ref[...] += g_col * act

    # Write the output tile once, in the caller's dtype, at the last expert.
    @pl.when(e == n_experts_grid - 1)
    def _():
        o_ref[...] = acc_ref[...].astype(o_ref.dtype)


def _pick_tile(dim, preferred, granule):
    """Largest divisor of `dim` that is <= preferred and a multiple of `granule`;
    falls back to the full dim (always a legal block).
    NOTE: for ragged dims with no aligned divisor, padding N/D_out would be
    preferable to a single oversized block; not needed at these shapes."""
    for t in (preferred, 1024, 512, 256, 128, 64, 32, 16, 8):
        if t <= preferred and t <= dim and dim % t == 0 and t % granule == 0:
            return t
    return dim


@functools.partial(jax.jit, static_argnames=("tn", "to"))
def moe_forward(x, wg, bg, we, be, *, tn=512, to=256):
    """x: [N, D_in], wg: [D_in, E], bg: [E], we: [E, D_in, D_out], be: [E, D_out].

    Pass `we` (and optionally `wg`) already in the desired compute dtype
    (e.g. bf16) so no full-weight cast runs on the per-forward path.  The
    output is returned in x.dtype.
    """
    N, D_in = x.shape
    E, _, D_out = we.shape
    out_dtype = x.dtype
    compute_dtype = we.dtype

    # bf16 packs (16, 128) per vreg -> use a 16 granule for the token tile.
    tn_granule = 16 if compute_dtype == jnp.bfloat16 else 8
    tn = _pick_tile(N, tn, tn_granule)
    to = _pick_tile(D_out, to, 128)

    # v7x has two TensorCores: make sure the parallel grid has >= 2 blocks.
    if (N // tn) * (D_out // to) < 2:
        half = tn // 2
        if half >= tn_granule and half % tn_granule == 0 and N % half == 0:
            tn = half

    n_blocks = N // tn
    o_blocks = D_out // to

    # Activation-sized casts only (weights come pre-cast by the caller).
    x_c = x.astype(compute_dtype)
    wg_c = wg.astype(compute_dtype)
    bg_f32 = bg.reshape(1, E).astype(jnp.float32)
    be_f32 = be.astype(jnp.float32)

    return pl.pallas_call(
        _moe_kernel,
        out_shape=jax.ShapeDtypeStruct((N, D_out), out_dtype),
        grid_spec=pltpu.PrefetchScalarGridSpec(
            num_scalar_prefetch=0,
            grid=(n_blocks, o_blocks, E),  # expert/reduction axis innermost
            in_specs=[
                # x tile: constant across (o, e) -> resident, fetched n_blocks
                # times total.
                pl.BlockSpec((tn, D_in), lambda n, o, e: (n, 0)),
                # Gating weights / bias: tiny, fully resident.
                pl.BlockSpec((D_in, E), lambda n, o, e: (0, 0)),
                pl.BlockSpec((1, E), lambda n, o, e: (0, 0)),
                # Expert-weight tile: the only block changing every grid step;
                # stream it with multi-buffering so the DMA stays hidden.
                pl.BlockSpec(
                    (pl.Squeezed(), D_in, to),
                    lambda n, o, e: (e, 0, o),
                    pipeline_mode=pl.Buffered(_WEIGHT_BUFFERS),
                ),
                # Expert biases: whole (E, to) stripe resident per output tile;
                # row e is sliced dynamically in the kernel.
                pl.BlockSpec((E, to), lambda n, o, e: (0, o)),
            ],
            out_specs=pl.BlockSpec((tn, to), lambda n, o, e: (n, o)),
            scratch_shapes=[
                pltpu.VMEM((tn, to), jnp.float32),  # f32 accumulator
                pltpu.VMEM((tn, E), jnp.float32),   # 0.5 * softmax(gates)
            ],
        ),
        compiler_params=pltpu.CompilerParams(
            dimension_semantics=("parallel", "parallel", "arbitrary"),
            vmem_limit_bytes=_VMEM_LIMIT,
        ),
    )(x_c, wg_c, bg_f32, we, be_f32)


def moe_reference(x, wg, bg, we, be, compute_dtype=None):
    """Pure-JAX reference mirroring the PyTorch MoELayer forward.  When
    compute_dtype is set it mirrors the kernel's operand-cast / f32-accumulate
    policy."""
    xg = x if compute_dtype is None else x.astype(compute_dtype)
    wgg = wg if compute_dtype is None else wg.astype(compute_dtype)
    wee = we if compute_dtype is None else we.astype(compute_dtype)
    logits = (
        jnp.dot(xg, wgg, preferred_element_type=jnp.float32)
        + bg.astype(jnp.float32)
    )
    gates = jax.nn.softmax(logits, axis=-1)
    h = (
        jnp.einsum("nd,edo->eno", xg, wee, preferred_element_type=jnp.float32)
        + be[:, None, :].astype(jnp.float32)
    )
    h = 0.5 * h * (1.0 + jax.lax.erf(h * _INV_SQRT2))
    return jnp.einsum("eno,ne->no", h, gates, preferred_element_type=jnp.float32)


if __name__ == "__main__":
    N, D_IN, D_OUT, E = 256, 128, 256, 4

    key = jax.random.PRNGKey(0)
    kx, kwg, kbg, kwe, kbe = jax.random.split(key, 5)

    x = jax.random.normal(kx, (N, D_IN), dtype=jnp.float32)
    scale = 1.0 / jnp.sqrt(D_IN)
    wg = jax.random.uniform(kwg, (D_IN, E), jnp.float32, -1.0, 1.0) * scale
    bg = jax.random.uniform(kbg, (E,), jnp.float32, -1.0, 1.0) * scale
    we = jax.random.uniform(kwe, (E, D_IN, D_OUT), jnp.float32, -1.0, 1.0) * scale
    be = jax.random.uniform(kbe, (E, D_OUT), jnp.float32, -1.0, 1.0) * scale

    # Expert weights stored persistently in bf16 (cast once, outside the
    # per-forward path).
    we_bf16 = we.astype(jnp.bfloat16)

    # tn/to=128 exercises a multi-tile (2, 2, 4) grid at this small size.
    out = moe_forward(x, wg, bg, we_bf16, be, tn=128, to=128)
    out = jax.block_until_ready(out)
    assert out.shape == (N, D_OUT) and out.dtype == x.dtype

    # Tight check vs a reference mirroring the kernel's bf16-operand /
    # f32-accumulate policy; looser sanity check vs full-f32 semantics.
    ref_bf16 = moe_reference(x, wg, bg, we, be, compute_dtype=jnp.bfloat16)
    assert bool(jnp.allclose(out, ref_bf16, rtol=2e-3, atol=2e-3)), (
        "mismatch vs bf16-policy reference"
    )
    ref_f32 = moe_reference(x, wg, bg, we, be)
    assert bool(jnp.allclose(out, ref_f32, rtol=2e-2, atol=2e-2)), (
        "mismatch vs f32 reference"
    )

    print("KERNEL_OK")
</pallas_src>

<mosaic_0001>
module attributes {stable_mosaic.version = 11 : i64} {
  func.func @_moe_kernel(%arg0: i32, %arg1: i32, %arg2: i32, %arg3: memref<128x128xbf16, #tpu.memory_space<vmem>>, %arg4: memref<128x4xbf16, #tpu.memory_space<vmem>>, %arg5: memref<1x4xf32, #tpu.memory_space<vmem>>, %arg6: memref<1x128x128xbf16, #tpu.memory_space<vmem>>, %arg7: memref<4x128xf32, #tpu.memory_space<vmem>>, %arg8: memref<128x128xf32, #tpu.memory_space<vmem>>, %arg9: memref<128x128xf32, #tpu.memory_space<vmem>>, %arg10: memref<128x4xf32, #tpu.memory_space<vmem>>) attributes {dimension_semantics = [#tpu.dimension_semantics<parallel>, #tpu.dimension_semantics<parallel>, #tpu.dimension_semantics<arbitrary>], iteration_bounds = array<i64: 2, 2, 4>, scalar_prefetch = 0 : i64, scratch_operands = 2 : i64, tpu.core_type = #tpu.core_type<tc>, window_params = [{transform_indices = @transform_0, window_bounds = array<i64: 128, 128>}, {pipeline_mode = #tpu.pipeline_mode<synchronous>, transform_indices = @transform_1, window_bounds = array<i64: 128, 4>}, {pipeline_mode = #tpu.pipeline_mode<synchronous>, transform_indices = @transform_2, window_bounds = array<i64: 1, 4>}, {pipeline_mode = #tpu.pipeline_mode<double_buffered>, transform_indices = @transform_3, window_bounds = array<i64: 1, 128, 128>}, {transform_indices = @transform_4, window_bounds = array<i64: 4, 128>}, {transform_indices = @transform_5, window_bounds = array<i64: 128, 128>}]} {
    %c0_i32 = arith.constant 0 : i32
    %0 = arith.cmpi eq, %arg2, %c0_i32 : i32
    %1 = arith.extui %0 : i1 to i32
    %c0_i32_0 = arith.constant 0 : i32
    %2 = arith.cmpi ne, %1, %c0_i32_0 : i32
    scf.if %2 {
      %c0_17 = arith.constant 0 : index
      %c0_18 = arith.constant 0 : index
      %33 = vector.load %arg3[%c0_17, %c0_18] : memref<128x128xbf16, #tpu.memory_space<vmem>>, vector<128x128xbf16>
      %c0_19 = arith.constant 0 : index
      %c0_20 = arith.constant 0 : index
      %34 = vector.load %arg4[%c0_19, %c0_20] : memref<128x4xbf16, #tpu.memory_space<vmem>>, vector<128x4xbf16>
      %cst_21 = arith.constant dense<0.000000e+00> : vector<128x4xf32>
      %35 = tpu.matmul %33, %34, %cst_21 {dimension_numbers = #tpu.dot_dimension_numbers<[1], [0], [0], [1], [0, 0, 1, 1], [], []>} : vector<128x128xbf16>, vector<128x4xbf16>, vector<128x4xf32> -> vector<128x4xf32>
      %c0_22 = arith.constant 0 : index
      %c0_23 = arith.constant 0 : index
      %36 = vector.load %arg5[%c0_22, %c0_23] : memref<1x4xf32, #tpu.memory_space<vmem>>, vector<1x4xf32>
      %37 = vector.broadcast %36 : vector<1x4xf32> to vector<128x4xf32>
      %38 = arith.addf %35, %37 : vector<128x4xf32>
      %cst_24 = arith.constant dense<0xFF800000> : vector<128xf32>
      %39 = vector.multi_reduction <maximumf>, %38, %cst_24 [1] : vector<128x4xf32> to vector<128xf32>
      %40 = vector.shape_cast %39 : vector<128xf32> to vector<128x1xf32>
      %41 = vector.broadcast %40 : vector<128x1xf32> to vector<128x4xf32>
      %42 = arith.subf %38, %41 : vector<128x4xf32>
      %43 = math.exp %42 : vector<128x4xf32>
      %cst_25 = arith.constant 5.000000e-01 : f32
      %44 = vector.broadcast %cst_25 : f32 to vector<128x4xf32>
      %45 = arith.mulf %44, %43 : vector<128x4xf32>
      %cst_26 = arith.constant dense<0.000000e+00> : vector<128xf32>
      %46 = vector.multi_reduction <add>, %43, %cst_26 [1] : vector<128x4xf32> to vector<128xf32>
      %47 = vector.shape_cast %46 : vector<128xf32> to vector<128x1xf32>
      %48 = vector.broadcast %47 : vector<128x1xf32> to vector<128x4xf32>
      %49 = arith.divf %45, %48 : vector<128x4xf32>
      %c0_27 = arith.constant 0 : index
      %c0_28 = arith.constant 0 : index
      %50 = vector.load %arg10[%c0_27, %c0_28] : memref<128x4xf32, #tpu.memory_space<vmem>>, vector<128x4xf32>
      tpu.vector_store %arg10[%c0_27, %c0_28], %49 {strides = array<i32>} : memref<128x4xf32, #tpu.memory_space<vmem>>, vector<128x4xf32>,
      %cst_29 = arith.constant 0.000000e+00 : f32
      %51 = vector.broadcast %cst_29 : f32 to vector<128x128xf32>
      %c0_30 = arith.constant 0 : index
      %c0_31 = arith.constant 0 : index
      %52 = vector.load %arg9[%c0_30, %c0_31] : memref<128x128xf32, #tpu.memory_space<vmem>>, vector<128x128xf32>
      tpu.vector_store %arg9[%c0_30, %c0_31], %51 {strides = array<i32>} : memref<128x128xf32, #tpu.memory_space<vmem>>, vector<128x128xf32>,
    } else {
    }
    %c0 = arith.constant 0 : index
    %c0_1 = arith.constant 0 : index
    %3 = vector.load %arg3[%c0, %c0_1] : memref<128x128xbf16, #tpu.memory_space<vmem>>, vector<128x128xbf16>
    %c0_2 = arith.constant 0 : index
    %c0_3 = arith.constant 0 : index
    %c0_4 = arith.constant 0 : index
    %4 = vector.load %arg6[%c0_2, %c0_3, %c0_4] : memref<1x128x128xbf16, #tpu.memory_space<vmem>>, vector<1x128x128xbf16>
    %5 = vector.shape_cast %4 : vector<1x128x128xbf16> to vector<128x128xbf16>
    %cst = arith.constant dense<0.000000e+00> : vector<128x128xf32>
    %6 = tpu.matmul %3, %5, %cst {dimension_numbers = #tpu.dot_dimension_numbers<[1], [0], [0], [1], [0, 0, 1, 1], [], []>} : vector<128x128xbf16>, vector<128x128xbf16>, vector<128x128xf32> -> vector<128x128xf32>
    %7 = arith.index_cast %arg2 : i32 to index
    %c0_5 = arith.constant 0 : index
    %8 = vector.load %arg7[%7, %c0_5] : memref<4x128xf32, #tpu.memory_space<vmem>>, vector<1x128xf32>
    %9 = vector.broadcast %8 : vector<1x128xf32> to vector<128x128xf32>
    %10 = arith.addf %6, %9 : vector<128x128xf32>
    %cst_6 = arith.constant 0.707106769 : f32
    %11 = vector.broadcast %cst_6 : f32 to vector<128x128xf32>
    %12 = arith.mulf %10, %11 : vector<128x128xf32>
    %13 = math.erf %12 : vector<128x128xf32>
    %cst_7 = arith.constant 1.000000e+00 : f32
    %14 = vector.broadcast %cst_7 : f32 to vector<128x128xf32>
    %15 = arith.addf %14, %13 : vector<128x128xf32>
    %16 = arith.mulf %10, %15 : vector<128x128xf32>
    %17 = tpu.iota {dimensions = array<i32: 1>} : vector<128x4xi32>
    %18 = vector.broadcast %arg2 : i32 to vector<128x4xi32>
    %19 = arith.cmpi eq, %17, %18 : vector<128x4xi32>
    %c0_8 = arith.constant 0 : index
    %c0_9 = arith.constant 0 : index
    %20 = vector.load %arg10[%c0_8, %c0_9] : memref<128x4xf32, #tpu.memory_space<vmem>>, vector<128x4xf32>
    %cst_10 = arith.constant 0.000000e+00 : f32
    %21 = vector.broadcast %cst_10 : f32 to vector<128x4xf32>
    %22 = arith.select %19, %20, %21 : vector<128x4xi1>, vector<128x4xf32>
    %cst_11 = arith.constant dense<0.000000e+00> : vector<128xf32>
    %23 = vector.multi_reduction <add>, %22, %cst_11 [1] : vector<128x4xf32> to vector<128xf32>
    %24 = vector.shape_cast %23 : vector<128xf32> to vector<128x1xf32>
    %c0_12 = arith.constant 0 : index
    %c0_13 = arith.constant 0 : index
    %25 = vector.load %arg9[%c0_12, %c0_13] : memref<128x128xf32, #tpu.memory_space<vmem>>, vector<128x128xf32>
    %26 = vector.broadcast %24 : vector<128x1xf32> to vector<128x128xf32>
    %27 = arith.mulf %26, %16 : vector<128x128xf32>
    %28 = arith.addf %25, %27 : vector<128x128xf32>
    %c0_14 = arith.constant 0 : index
    %c0_15 = arith.constant 0 : index
    %29 = vector.load %arg9[%c0_14, %c0_15] : memref<128x128xf32, #tpu.memory_space<vmem>>, vector<128x128xf32>
    tpu.vector_store %arg9[%c0_14, %c0_15], %28 {strides = array<i32>} : memref<128x128xf32, #tpu.memory_space<vmem>>, vector<128x128xf32>,
    %c3_i32 = arith.constant 3 : i32
    %30 = arith.cmpi eq, %arg2, %c3_i32 : i32
    %31 = arith.extui %30 : i1 to i32
    %c0_i32_16 = arith.constant 0 : i32
    %32 = arith.cmpi ne, %31, %c0_i32_16 : i32
    scf.if %32 {
      %c0_17 = arith.constant 0 : index
      %c0_18 = arith.constant 0 : index
      %33 = vector.load %arg9[%c0_17, %c0_18] : memref<128x128xf32, #tpu.memory_space<vmem>>, vector<128x128xf32>
      %c0_19 = arith.constant 0 : index
      %c0_20 = arith.constant 0 : index
      %34 = vector.load %arg8[%c0_19, %c0_20] : memref<128x128xf32, #tpu.memory_space<vmem>>, vector<128x128xf32>
      tpu.vector_store %arg8[%c0_19, %c0_20], %33 {strides = array<i32>} : memref<128x128xf32, #tpu.memory_space<vmem>>, vector<128x128xf32>,
    } else {
    }
    return
  }
  func.func @transform_0(%arg0: i32, %arg1: i32, %arg2: i32) -> (i32, i32) {
    %c0_i32 = arith.constant 0 : i32
    %c0_i32_0 = arith.constant 0 : i32
    return %arg0, %c0_i32 : i32, i32
  }
  func.func @transform_1(%arg0: i32, %arg1: i32, %arg2: i32) -> (i32, i32) {
    %c0_i32 = arith.constant 0 : i32
    %c0_i32_0 = arith.constant 0 : i32
    %c0_i32_1 = arith.constant 0 : i32
    return %c0_i32, %c0_i32_0 : i32, i32
  }
  func.func @transform_2(%arg0: i32, %arg1: i32, %arg2: i32) -> (i32, i32) {
    %c0_i32 = arith.constant 0 : i32
    %c0_i32_0 = arith.constant 0 : i32
    %c0_i32_1 = arith.constant 0 : i32
    return %c0_i32, %c0_i32_0 : i32, i32
  }
  func.func @transform_3(%arg0: i32, %arg1: i32, %arg2: i32) -> (i32, i32, i32) {
    %c0_i32 = arith.constant 0 : i32
    %c0_i32_0 = arith.constant 0 : i32
    return %arg2, %c0_i32, %arg1 : i32, i32, i32
  }
  func.func @transform_4(%arg0: i32, %arg1: i32, %arg2: i32) -> (i32, i32) {
    %c0_i32 = arith.constant 0 : i32
    %c0_i32_0 = arith.constant 0 : i32
    return %c0_i32, %arg1 : i32, i32
  }
  func.func @transform_5(%arg0: i32, %arg1: i32, %arg2: i32) -> (i32, i32) {
    %c0_i32 = arith.constant 0 : i32
    return %arg0, %arg1 : i32, i32
  }
}

</mosaic_0001>

<llo_original>
// kernel: moe_forward.1
$region0: #{moe_forward.1}
  #allocation0 [shape = 'u32[]', space=smem, size = 0x4, offset = 0x4, fixed_abs, tag = 'smem constant byte address 0x4 - core index']
  #allocation1 [shape = 'u32[144,128]{1,0:T(1,128)}', space=vmem, size = 0x12000, scoped, tag = 'internal scratch']
  #allocation2 [shape = 'f32[128,128]{1,0:T(8,128)}', space=vmem, size = 0x10000, scoped, tag = 'scratch operand']
  #allocation3 [shape = 'f32[128,4]{1,0:T(8,128)}', space=vmem, size = 0x10000, scoped, tag = 'scratch operand']
  %s0 = inlined_call_operand.vmem [shape: bf16[256,128], index: 0, kind: input, shape index: {}]
  %s1 = inlined_call_operand.vmem [shape: bf16[128,4], index: 1, kind: input, shape index: {}]
  %s2 = inlined_call_operand.vmem [shape: f32[1,4], index: 2, kind: input, shape index: {}]
  %s3 = inlined_call_operand.hbm [shape: bf16[4,128,256], index: 3, kind: input, shape index: {}]
  %s4 = inlined_call_operand.vmem [shape: f32[4,256], index: 4, kind: input, shape index: {}]
  %s5 = inlined_call_operand.hbm [shape: f32[256,256], index: 5, kind: output, shape index: {}]
  %s6 = sld [smem:[#allocation0]]
  $region65: #{moe_forward.1} parent=0
    _
  %s8 = ssub.s32 1, %s6
  %s9 = scalar_select 0, %s8, %s6
  $region1: #{moe_forward.1} parent=0
    #allocation4 [shape = 'u8[65536]{0}', space=vmem, size = 0x10000, scoped, tag = 'input window, operand 3']
    #allocation5 [shape = 's32[2]{0}', space=sflag, size = 0x8, scoped, tag = 'scoped memory for moe_forward.1']
    #allocation6 [shape = 's32[2]{0}', space=sflag, size = 0x8, scoped, tag = 'scoped memory for moe_forward.1']
    #allocation7 [shape = 'u8[131072]{0}', space=vmem, size = 0x20000, scoped, tag = 'output window, operand 0']
    %10 = vsyncpa [#allocation5], 0
    %s11 = scalar_lea.sflag [#allocation5], 1
    %12 = vsyncpa %s11, 0
    %13 = vsyncpa [#allocation6], 0
    %s14 = scalar_lea.sflag [#allocation6], 1
    %15 = vsyncpa %s14, 0
    loop: start=0, step=1, limit=18
    $region2: #{moe_forward.1} parent=1 // loop_pre_header
      _
    $region3: #{moe_forward.1} parent=1 // loop_header
      %s17 = sphi 0, %s21
      %p18 = scmp.ge.s32.totalorder %s17, 18
      %s24 = sphi 0, %s43
      %s25 = sphi 0, %s39
      %s26 = sphi 0, %s35
      %s27 = sphi 0, %s24
      %s28 = sphi 0, %s25
      %s29 = sphi 0, %s26
      %s30 = sphi 0, %s27
      %s31 = sphi 0, %s28
      %s32 = sphi 0, %s29
      %s46 = sphi 0, %s48
      %s49 = sphi 0, %s46
      %s50 = sphi 0, %s49
      %s66 = sphi 0, %s50
      %s70 = sphi 0, %s70
      %s72 = sphi 0, %s70
      %s73 = sphi 0, %s72
      %s87 = sphi 0, %s73
      %s91 = sphi 0, %s91
      %s93 = sphi 0, %s91
      %s94 = sphi 0, %s93
      %s108 = sphi 0, %s94
      %s116 = sphi 0, %s118
      %s119 = sphi 0, %s116
      %s120 = sphi 0, %s119
      %s136 = sphi 0, %s120
      %s142 = sphi 0, %s144
      %s145 = sphi 0, %s142
      %s146 = sphi 0, %s145
      %s162 = sphi 0, %s146
      %s170 = sphi 0, %s172
      %s173 = sphi 0, %s170
      %s174 = sphi 0, %s173
      %s190 = sphi 0, %s174
    $region4: #{moe_forward.1} parent=1 // loop_header_branch
      %20 = sbr.rel (%p18) target = $region8
    $region5: #{moe_forward.1} parent=1 // loop_body
      %s22 = ssub.s32 %s17, 1
      %s23 = ssub.s32 %s17, 2
      %s33 = sadd.s32 1, %s26
      %p34 = scmp.ge.s32.totalorder %s33, 4
      %s35 = scalar_select %p34, 0, %s33
      %s36 = sadd.s32 1, %s25
      %s37 = scalar_select %p34, %s36, %s25
      %p38 = scmp.ge.s32.totalorder %s37, 2
      %s39 = scalar_select %p38, 0, %s37
      %s40 = sadd.s32 1, %s24
      %s41 = scalar_select %p38, %s40, %s24
      %p42 = scmp.ge.s32.totalorder %s41, 2
      %s43 = scalar_select %p42, 0, %s41
      %s44 = ssub.s32 %s24, %s43
      %p45 = scmp.eq.s32.totalorder %s44, 0
      %s47 = sadd.s32 %s46, 1
      %s48 = scalar_select %p45, %s46, %s47
      %p51 = pneg %p45
      %p52 = scmp.eq.s32.totalorder %s17, 15
      %p53 = por %p51, %p52
      %p54 = scmp.ne.s32.totalorder %s46, %s49
      %p55 = scmp.eq.s32.totalorder %s17, 0
      %p56 = por %p54, %p55
      %p57 = scmp.ne.s32.totalorder %s46, %s49
      %p58 = scmp.eq.s32.totalorder %s22, 15
      %p59 = por %p57, %p58
      %p60 = scmp.ne.s32.totalorder %s49, %s50
      %p61 = scmp.eq.s32.totalorder %s22, 0
      %p62 = por %p60, %p61
      %p63 = scmp.ne.s32.totalorder %s49, %s50
      %p64 = scmp.eq.s32.totalorder %s23, 15
      %p65 = por %p63, %p64
      %p67 = scmp.ne.s32.totalorder %s50, %s66
      %p68 = scmp.eq.s32.totalorder %s23, 0
      %p69 = por %p67, %p68
      %s71 = sadd.s32 %s70, 1
      %p74 = scmp.eq.s32.totalorder %s17, 15
      %p75 = scmp.ne.s32.totalorder %s70, %s72
      %p76 = scmp.eq.s32.totalorder %s17, 0
      %p77 = por %p75, %p76
      %p78 = scmp.ne.s32.totalorder %s70, %s72
      %p79 = scmp.eq.s32.totalorder %s22, 15
      %p80 = por %p78, %p79
      %p81 = scmp.ne.s32.totalorder %s72, %s73
      %p82 = scmp.eq.s32.totalorder %s22, 0
      %p83 = por %p81, %p82
      %p84 = scmp.ne.s32.totalorder %s72, %s73
      %p85 = scmp.eq.s32.totalorder %s23, 15
      %p86 = por %p84, %p85
      %p88 = scmp.ne.s32.totalorder %s73, %s87
      %p89 = scmp.eq.s32.totalorder %s23, 0
      %p90 = por %p88, %p89
      %s92 = sadd.s32 %s91, 1
      %p95 = scmp.eq.s32.totalorder %s17, 15
      %p96 = scmp.ne.s32.totalorder %s91, %s93
      %p97 = scmp.eq.s32.totalorder %s17, 0
      %p98 = por %p96, %p97
      %p99 = scmp.ne.s32.totalorder %s91, %s93
      %p100 = scmp.eq.s32.totalorder %s22, 15
      %p101 = por %p99, %p100
      %p102 = scmp.ne.s32.totalorder %s93, %s94
      %p103 = scmp.eq.s32.totalorder %s22, 0
      %p104 = por %p102, %p103
      %p105 = scmp.ne.s32.totalorder %s93, %s94
      %p106 = scmp.eq.s32.totalorder %s23, 15
      %p107 = por %p105, %p106
      %p109 = scmp.ne.s32.totalorder %s94, %s108
      %p110 = scmp.eq.s32.totalorder %s23, 0
      %p111 = por %p109, %p110
      %s112 = ssub.s32 %s26, %s35
      %s113 = ssub.s32 %s25, %s39
      %s114 = sor.u32 %s112, %s113
      %p115 = scmp.eq.s32.totalorder %s114, 0
      %s117 = sadd.s32 %s116, 1
      %s118 = scalar_select %p115, %s116, %s117
      %p121 = pneg %p115
      %p122 = scmp.eq.s32.totalorder %s17, 15
      %p123 = por %p121, %p122
      %p124 = scmp.ne.s32.totalorder %s116, %s119
      %p125 = scmp.eq.s32.totalorder %s17, 0
      %p126 = por %p124, %p125
      %p127 = scmp.ne.s32.totalorder %s116, %s119
      %p128 = scmp.eq.s32.totalorder %s22, 15
      %p129 = por %p127, %p128
      %p130 = scmp.ne.s32.totalorder %s119, %s120
      %p131 = scmp.eq.s32.totalorder %s22, 0
      %p132 = por %p130, %p131
      %p133 = scmp.ne.s32.totalorder %s119, %s120
      %p134 = scmp.eq.s32.totalorder %s23, 15
      %p135 = por %p133, %p134
      %p137 = scmp.ne.s32.totalorder %s120, %s136
      %p138 = scmp.eq.s32.totalorder %s23, 0
      %p139 = por %p137, %p138
      %s140 = ssub.s32 %s25, %s39
      %p141 = scmp.eq.s32.totalorder %s140, 0
      %s143 = sadd.s32 %s142, 1
      %s144 = scalar_select %p141, %s142, %s143
      %p147 = pneg %p141
      %p148 = scmp.eq.s32.totalorder %s17, 15
      %p149 = por %p147, %p148
      %p150 = scmp.ne.s32.totalorder %s142, %s145
      %p151 = scmp.eq.s32.totalorder %s17, 0
      %p152 = por %p150, %p151
      %p153 = scmp.ne.s32.totalorder %s142, %s145
      %p154 = scmp.eq.s32.totalorder %s22, 15
      %p155 = por %p153, %p154
      %p156 = scmp.ne.s32.totalorder %s145, %s146
      %p157 = scmp.eq.s32.totalorder %s22, 0
      %p158 = por %p156, %p157
      %p159 = scmp.ne.s32.totalorder %s145, %s146
      %p160 = scmp.eq.s32.totalorder %s23, 15
      %p161 = por %p159, %p160
      %p163 = scmp.ne.s32.totalorder %s146, %s162
      %p164 = scmp.eq.s32.totalorder %s23, 0
      %p165 = por %p163, %p164
      %s166 = ssub.s32 %s24, %s43
      %s167 = ssub.s32 %s25, %s39
      %s168 = sor.u32 %s166, %s167
      %p169 = scmp.eq.s32.totalorder %s168, 0
      %s171 = sadd.s32 %s170, 1
      %s172 = scalar_select %p169, %s170, %s171
      %p175 = pneg %p169
      %p176 = scmp.eq.s32.totalorder %s17, 15
      %p177 = por %p175, %p176
      %p178 = scmp.ne.s32.totalorder %s170, %s173
      %p179 = scmp.eq.s32.totalorder %s17, 0
      %p180 = por %p178, %p179
      %p181 = scmp.ne.s32.totalorder %s170, %s173
      %p182 = scmp.eq.s32.totalorder %s22, 15
      %p183 = por %p181, %p182
      %p184 = scmp.ne.s32.totalorder %s173, %s174
      %p185 = scmp.eq.s32.totalorder %s22, 0
      %p186 = por %p184, %p185
      %p187 = scmp.ne.s32.totalorder %s173, %s174
      %p188 = scmp.eq.s32.totalorder %s23, 15
      %p189 = por %p187, %p188
      %p191 = scmp.ne.s32.totalorder %s174, %s190
      %p192 = scmp.eq.s32.totalorder %s23, 0
      %p193 = por %p191, %p192
      %p194 = scmp.le.s32.totalorder 1, %s17
      %p195 = scmp.lt.s32.totalorder %s17, 17
      %p196 = pnand %p194, %p195
      %p197 = pneg %p196
      // Predicated region
      $region9: #{moe_forward.1} parent=5 // pred_check
        _
      $region10: #{moe_forward.1} parent=5 // pred_check_branch
        %199 = sbr.rel (%p196) target = $region12
      $region11: #{moe_forward.1} parent=5 // pred_region
        %s200 = ssub.s32 %s17, 1
        // Predicated region
        $region13: #{moe_forward.1} parent=11 // pred_check
          %p201 = pneg %p83
        $region14: #{moe_forward.1} parent=11 // pred_check_branch
          %203 = sbr.rel (%p201) target = $region16
        $region15: #{moe_forward.1} parent=11 // pred_region
          _
        $region16: #{moe_forward.1} parent=11 // pred_fallthru
          _
        // Predicated region
        $region17: #{moe_forward.1} parent=11 // pred_check
          %p204 = pneg %p104
        $region18: #{moe_forward.1} parent=11 // pred_check_branch
          %206 = sbr.rel (%p204) target = $region20
        $region19: #{moe_forward.1} parent=11 // pred_region
          _
        $region20: #{moe_forward.1} parent=11 // pred_fallthru
          _
      $region12: #{moe_forward.1} parent=5 // pred_fallthru
        _
      %p207 = scmp.lt.s32.totalorder %s17, 16
      // Predicated region
      $region21: #{moe_forward.1} parent=5 // pred_check
        %p208 = pneg %p207
      $region22: #{moe_forward.1} parent=5 // pred_check_branch
        %210 = sbr.rel (%p208) target = $region24
      $region23: #{moe_forward.1} parent=5 // pred_region
        // Predicated region
        $region25: #{moe_forward.1} parent=23 // pred_check
          %p211 = pneg %p56
        $region26: #{moe_forward.1} parent=23 // pred_check_branch
          %213 = sbr.rel (%p211) target = $region28
        $region27: #{moe_forward.1} parent=23 // pred_region
          %s214 = smul.u32 16, %s24
          %p215 = scmp.lt.s32.totalorder %s214, 31
          %s216 = scalar_select %p215, %s214, 31
          %s217 = smul.addr %s216, 4
          %s218 = scalar_lea.vmem %s0, %s217
          %s219 = smul.u32 16, %s24
        $region28: #{moe_forward.1} parent=23 // pred_fallthru
          _
        // Predicated region
        $region29: #{moe_forward.1} parent=23 // pred_check
          %p220 = pneg %p126
        $region30: #{moe_forward.1} parent=23 // pred_check_branch
          %222 = sbr.rel (%p220) target = $region32
        $region31: #{moe_forward.1} parent=23 // pred_region
          %s223 = sand.u32 %s116, 1
          %s224 = scalar_lea.sflag [#allocation5], %s223
          %s225 = sand.u32 %s116, 1
          %s226 = smul.addr %s225, 64
          %s227 = scalar_lea.vmem [#allocation4], %s226
          %s229 = ssub.s32 1024, 1024
          %230 = vsyncadd %s224, %s229
          %s231 = smul.addr %s26, 32
          %s232 = sadd.s32 %s25, %s231
          %s233 = smul.addr %s232, 64
          %s234 = scalar_lea.hbm %s3, %s233
          %s235 = sshll.u32 %s227, 4
          %s236 = int_to_ptr.vmem [resolvable:$true] %s235
          %241 = dma.hbm_to_vmem [thread:$0]  %s234, 1024, %s236, %s224, 128, 64, 4
        $region32: #{moe_forward.1} parent=23 // pred_fallthru
          _
        // Predicated region
        $region33: #{moe_forward.1} parent=23 // pred_check
          %p242 = pneg %p152
        $region34: #{moe_forward.1} parent=23 // pred_check_branch
          %244 = sbr.rel (%p242) target = $region36
        $region35: #{moe_forward.1} parent=23 // pred_region
          %p245 = scmp.lt.s32.totalorder %s25, 1
          %s246 = scalar_select %p245, %s25, 1
          %s247 = smul.addr %s246, 4
          %s248 = scalar_lea.vmem %s4, %s247
        $region36: #{moe_forward.1} parent=23 // pred_fallthru
          _
      $region24: #{moe_forward.1} parent=5 // pred_fallthru
        _
      %p249 = scmp.le.s32.totalorder 1, %s17
      %p250 = scmp.lt.s32.totalorder %s17, 17
      %p251 = pnand %p249, %p250
      %p252 = pneg %p251
      // Predicated region
      $region37: #{moe_forward.1} parent=5 // pred_check
        _
      $region38: #{moe_forward.1} parent=5 // pred_check_branch
        %254 = sbr.rel (%p251) target = $region40
      $region39: #{moe_forward.1} parent=5 // pred_region
        %s255 = ssub.s32 %s17, 1
        %s256 = sand.u32 %s119, 1
        %s257 = scalar_lea.sflag [#allocation5], %s256
        %s258 = sand.u32 %s119, 1
        %s259 = smul.addr %s258, 64
        %s260 = scalar_lea.vmem [#allocation4], %s259
        // Predicated region
        $region41: #{moe_forward.1} parent=39 // pred_check
          %p261 = pneg %p132
        $region42: #{moe_forward.1} parent=39 // pred_check_branch
          %263 = sbr.rel (%p261) target = $region44
        $region43: #{moe_forward.1} parent=39 // pred_region
          %264 = dma.done %s257, 1024
        $region44: #{moe_forward.1} parent=39 // pred_fallthru
          _
        %s265 = smul.u32 16, %s27
        %p266 = scmp.lt.s32.totalorder %s265, 31
        %s267 = scalar_select %p266, %s265, 31
        %s268 = smul.addr %s267, 4
        %s269 = scalar_lea.vmem %s0, %s268
        %p270 = pneg %p62
        %p271 = pneg %p59
        %p272 = pneg %p83
        %p273 = pneg %p80
        %p274 = pneg %p104
        %p275 = pneg %p101
        %s276 = sand.u32 %s119, 1
        %s277 = scalar_lea.sflag [#allocation5], %s276
        %s278 = sand.u32 %s119, 1
        %s279 = smul.addr %s278, 64
        %s280 = scalar_lea.vmem [#allocation4], %s279
        %p281 = pneg %p132
        %p282 = pneg %p129
        %p283 = scmp.lt.s32.totalorder %s28, 1
        %s284 = scalar_select %p283, %s28, 1
        %s285 = smul.addr %s284, 4
        %s286 = scalar_lea.vmem %s4, %s285
        %p287 = pneg %p158
        %p288 = pneg %p155
        %p289 = pneg %p186
        %p290 = pneg %p183
        %s291 = sand.u32 %s173, 1
        %s292 = scalar_lea.sflag [#allocation6], %s291
        %s293 = sand.u32 %s173, 1
        %s294 = smul.addr %s293, 128
        %s295 = scalar_lea.vmem [#allocation7], %s294
        %s296 = smul.u32 16, %s27
        %p297 = scmp.lt.s32.totalorder %s296, 31
        %s298 = scalar_select %p297, %s296, 31
        %s299 = smul.addr %s298, 4
        %s300 = scalar_lea.vmem %s0, %s299
        %s301 = smul.u32 16, %s27
        %p302 = scmp.lt.s32.totalorder %s28, 1
        %s303 = scalar_select %p302, %s28, 1
        %s304 = smul.addr %s303, 4
        %s305 = scalar_lea.vmem %s4, %s304
        %s306 = smul.u32 16, %s27
        %p308 = scmp.eq.s32.totalorder %s29, 0
        // Predicated region
        $region45: #{moe_forward.1} parent=39 // pred_check
          %p309 = pneg %p308
        $region46: #{moe_forward.1} parent=39 // pred_check_branch
          %311 = sbr.rel (%p309) target = $region48
        $region47: #{moe_forward.1} parent=39 // pred_region
          %v312 = vld [vmem:[%s300] sm:$0xf]
          %v313 = vld [vmem:[%s300 + $0x4] sm:$0xf]
          %v314 = vld [vmem:[%s300 + $0x8] sm:$0xf]
          %v315 = vld [vmem:[%s300 + $0xc] sm:$0xf]
          %v316 = vld [vmem:[%s300 + $0x10] sm:$0xf]
          %v317 = vld [vmem:[%s300 + $0x14] sm:$0xf]
          %v318 = vld [vmem:[%s300 + $0x18] sm:$0xf]
          %v319 = vld [vmem:[%s300 + $0x1c] sm:$0xf]
          %v320 = vld [vmem:[%s300 + $0x20] sm:$0xf]
          %v321 = vld [vmem:[%s300 + $0x24] sm:$0xf]
          %v322 = vld [vmem:[%s300 + $0x28] sm:$0xf]
          %v323 = vld [vmem:[%s300 + $0x2c] sm:$0xf]
          %v324 = vld [vmem:[%s300 + $0x30] sm:$0xf]
          %v325 = vld [vmem:[%s300 + $0x34] sm:$0xf]
          %v326 = vld [vmem:[%s300 + $0x38] sm:$0xf]
          %v327 = vld [vmem:[%s300 + $0x3c] sm:$0xf]
          %v328 = vld [vmem:[%s1] sm:$0xf]
          %v329 = vld [vmem:[%s1 + $0x4] sm:$0xf]
          %v330 = vld [vmem:[%s1 + $0x8] sm:$0xf]
          %v331 = vld [vmem:[%s1 + $0xc] sm:$0xf]
          %v332 = vld [vmem:[%s1 + $0x10] sm:$0xf]
          %v333 = vld [vmem:[%s1 + $0x14] sm:$0xf]
          %v334 = vld [vmem:[%s1 + $0x18] sm:$0xf]
          %v335 = vld [vmem:[%s1 + $0x1c] sm:$0xf]
          %v336 = vld [vmem:[%s1 + $0x20] sm:$0xf]
          %v337 = vld [vmem:[%s1 + $0x24] sm:$0xf]
          %v338 = vld [vmem:[%s1 + $0x28] sm:$0xf]
          %v339 = vld [vmem:[%s1 + $0x2c] sm:$0xf]
          %v340 = vld [vmem:[%s1 + $0x30] sm:$0xf]
          %v341 = vld [vmem:[%s1 + $0x34] sm:$0xf]
          %v342 = vld [vmem:[%s1 + $0x38] sm:$0xf]
          %v343 = vld [vmem:[%s1 + $0x3c] sm:$0xf]
          %v344 = vld [vmem:[%s2] sm:$0x1]
          %v346 = vlaneseq
          %v347 = vshrl.u32 %v346, 7
          %v348 = vsub.s32 0, %v347
          %v349 = vrot.slane %v344, %v348
          %v367 = vunpack.c.l.b16 %v312
          %v368 = vunpack.c.l.b16 %v313
          %v369 = vunpack.c.l.b16 %v314
          %v370 = vunpack.c.l.b16 %v315
          %v371 = vunpack.c.l.b16 %v316
          %v372 = vunpack.c.l.b16 %v317
          %v373 = vunpack.c.l.b16 %v318
          %v374 = vunpack.c.l.b16 %v319
          %v375 = vunpack.c.l.b16 %v320
          %v376 = vunpack.c.l.b16 %v321
          %v377 = vunpack.c.l.b16 %v322
          %v378 = vunpack.c.l.b16 %v323
          %v379 = vunpack.c.l.b16 %v324
          %v380 = vunpack.c.l.b16 %v325
          %v381 = vunpack.c.l.b16 %v326
          %v382 = vunpack.c.l.b16 %v327
          %v383 = vpack.c.b16 %v368, %v367
          %v384 = vpack.c.b16 %v370, %v369
          %v385 = vpack.c.b16 %v372, %v371
          %v386 = vpack.c.b16 %v374, %v373
          %v387 = vpack.c.b16 %v376, %v375
          %v388 = vpack.c.b16 %v378, %v377
          %v389 = vpack.c.b16 %v380, %v379
          %v390 = vpack.c.b16 %v382, %v381
          %v415 = vunpack.c.l.b16 %v328
          %v416 = vunpack.c.l.b16 %v329
          %v417 = vunpack.c.l.b16 %v330
          %v418 = vunpack.c.l.b16 %v331
          %v419 = vunpack.c.l.b16 %v332
          %v420 = vunpack.c.l.b16 %v333
          %v421 = vunpack.c.l.b16 %v334
          %v422 = vunpack.c.l.b16 %v335
          %v423 = vunpack.c.l.b16 %v336
          %v424 = vunpack.c.l.b16 %v337
          %v425 = vunpack.c.l.b16 %v338
          %v426 = vunpack.c.l.b16 %v339
          %v427 = vunpack.c.l.b16 %v340
          %v428 = vunpack.c.l.b16 %v341
          %v429 = vunpack.c.l.b16 %v342
          %v430 = vunpack.c.l.b16 %v343
          %v431 = vpack.c.b16 %v416, %v415
          %v432 = vpack.c.b16 %v418, %v417
          %v433 = vpack.c.b16 %v420, %v419
          %v434 = vpack.c.b16 %v422, %v421
          %v435 = vpack.c.b16 %v424, %v423
          %v436 = vpack.c.b16 %v426, %v425
          %v437 = vpack.c.b16 %v428, %v427
          %v438 = vpack.c.b16 %v430, %v429
          %447 = vmatprep.subr.bf16.mxu0 0
          %448 = vmatpush1.bf16.msra.mxu0 %v431
          %449 = vmatprep.subr.bf16.mxu0 0
          %450 = vmatpush1.bf16.msra.mxu0 %v432
          %451 = vmatprep.subr.bf16.mxu0 0
          %452 = vmatpush1.bf16.msra.mxu0 %v433
          %453 = vmatprep.subr.bf16.mxu0 0
          %454 = vmatpush1.bf16.msra.mxu0 %v434
          %455 = vmatprep.subr.bf16.mxu0 0
          %456 = vmatpush1.bf16.msra.mxu0 %v435
          %457 = vmatprep.subr.bf16.mxu0 0
          %458 = vmatpush1.bf16.msra.mxu0 %v436
          %459 = vmatprep.subr.bf16.mxu0 0
          %460 = vmatpush1.bf16.msra.mxu0 %v437
          %461 = vmatprep.subr.bf16.mxu0 0
          %462 = vmatpush1.bf16.msra.mxu0 %v438
          %463 = vmatprep.subr.bf16.mxu0 0
          %464 = vmatpush1.bf16.msra.mxu0 0
          %465 = vmatprep.subr.bf16.mxu0 0
          %466 = vmatpush1.bf16.msra.mxu0 0
          %467 = vmatprep.subr.bf16.mxu0 0
          %468 = vmatpush1.bf16.msra.mxu0 0
          %469 = vmatprep.subr.bf16.mxu0 0
          %470 = vmatpush1.bf16.msra.mxu0 0
          %471 = vmatprep.subr.bf16.mxu0 0
          %472 = vmatpush1.bf16.msra.mxu0 0
          %473 = vmatprep.subr.bf16.mxu0 0
          %474 = vmatpush1.bf16.msra.mxu0 0
          %475 = vmatprep.subr.bf16.mxu0 0
          %476 = vmatpush1.bf16.msra.mxu0 0
          %477 = vmatprep.subr.bf16.mxu0 0
          %478 = vmatpush1.bf16.msra.mxu0 0
          %479 = vmatprep.mubr.bf16.mxu0 0
          %480 = vmatmul.mubr.bf16.gmra.mrb[0].mxu0 %v383
          %v481 = vpop.f32.mrb[0].mxu0
          %v482 = vadd.f32 %v349, %v481
          %v483 = vpop.f32.mrb[0].mxu0
          %v484 = vpop.f32.mrb[0].mxu0
          %v485 = vadd.f32 %v349, %v484
          %v486 = vpop.f32.mrb[0].mxu0
          %487 = vmatprep.mubr.bf16.mxu0 0
          %488 = vmatmul.mubr.bf16.gmra.mrb[0].mxu0 %v384
          %v489 = vpop.f32.mrb[0].mxu0
          %v490 = vadd.f32 %v349, %v489
          %v491 = vpop.f32.mrb[0].mxu0
          %v492 = vpop.f32.mrb[0].mxu0
          %v493 = vadd.f32 %v349, %v492
          %v494 = vpop.f32.mrb[0].mxu0
          %495 = vmatprep.mubr.bf16.mxu0 0
          %496 = vmatmul.mubr.bf16.gmra.mrb[0].mxu0 %v385
          %v497 = vpop.f32.mrb[0].mxu0
          %v498 = vadd.f32 %v349, %v497
          %v499 = vpop.f32.mrb[0].mxu0
          %v500 = vpop.f32.mrb[0].mxu0
          %v501 = vadd.f32 %v349, %v500
          %v502 = vpop.f32.mrb[0].mxu0
          %503 = vmatprep.mubr.bf16.mxu0 0
          %504 = vmatmul.mubr.bf16.gmra.mrb[0].mxu0 %v386
          %v505 = vpop.f32.mrb[0].mxu0
          %v506 = vadd.f32 %v349, %v505
          %v507 = vpop.f32.mrb[0].mxu0
          %v508 = vpop.f32.mrb[0].mxu0
          %v509 = vadd.f32 %v349, %v508
          %v510 = vpop.f32.mrb[0].mxu0
          %511 = vmatprep.mubr.bf16.mxu0 0
          %512 = vmatmul.mubr.bf16.gmra.mrb[0].mxu0 %v387
          %v513 = vpop.f32.mrb[0].mxu0
          %v514 = vadd.f32 %v349, %v513
          %v515 = vpop.f32.mrb[0].mxu0
          %v516 = vpop.f32.mrb[0].mxu0
          %v517 = vadd.f32 %v349, %v516
          %v518 = vpop.f32.mrb[0].mxu0
          %519 = vmatprep.mubr.bf16.mxu0 0
          %520 = vmatmul.mubr.bf16.gmra.mrb[0].mxu0 %v388
          %v521 = vpop.f32.mrb[0].mxu0
          %v522 = vadd.f32 %v349, %v521
          %v523 = vpop.f32.mrb[0].mxu0
          %v524 = vpop.f32.mrb[0].mxu0
          %v525 = vadd.f32 %v349, %v524
          %v526 = vpop.f32.mrb[0].mxu0
          %527 = vmatprep.mubr.bf16.mxu0 0
          %528 = vmatmul.mubr.bf16.gmra.mrb[0].mxu0 %v389
          %v529 = vpop.f32.mrb[0].mxu0
          %v530 = vadd.f32 %v349, %v529
          %v531 = vpop.f32.mrb[0].mxu0
          %v532 = vpop.f32.mrb[0].mxu0
          %v533 = vadd.f32 %v349, %v532
          %v534 = vpop.f32.mrb[0].mxu0
          %535 = vmatprep.mubr.bf16.mxu0 0
          %536 = vmatmul.mubr.bf16.gmra.mrb[0].mxu0 %v390
          %v537 = vpop.f32.mrb[0].mxu0
          %v538 = vadd.f32 %v349, %v537
          %v539 = vpop.f32.mrb[0].mxu0
          %v540 = vpop.f32.mrb[0].mxu0
          %v541 = vadd.f32 %v349, %v540
          %v542 = vpop.f32.mrb[0].mxu0
          %543 = vdwg.mxu0
          %vm544 = vcmask 31744
          %v545 = vsel %vm544, %v482, -inf
          %546 = vmax.xlane.f32.xlu0 %v545
          %v547 = vpop.xlane.xlu0 %546
          %v548 = vsel %vm544, %v485, -inf
          %549 = vmax.xlane.f32.xlu0 %v548
          %v550 = vpop.xlane.xlu0 %549
          %v551 = vsel %vm544, %v490, -inf
          %552 = vmax.xlane.f32.xlu0 %v551
          %v553 = vpop.xlane.xlu0 %552
          %v554 = vsel %vm544, %v493, -inf
          %555 = vmax.xlane.f32.xlu0 %v554
          %v556 = vpop.xlane.xlu0 %555
          %v557 = vsel %vm544, %v498, -inf
          %558 = vmax.xlane.f32.xlu0 %v557
          %v559 = vpop.xlane.xlu0 %558
          %v560 = vsel %vm544, %v501, -inf
          %561 = vmax.xlane.f32.xlu0 %v560
          %v562 = vpop.xlane.xlu0 %561
          %v563 = vsel %vm544, %v506, -inf
          %564 = vmax.xlane.f32.xlu0 %v563
          %v565 = vpop.xlane.xlu0 %564
          %v566 = vsel %vm544, %v509, -inf
          %567 = vmax.xlane.f32.xlu0 %v566
          %v568 = vpop.xlane.xlu0 %567
          %v569 = vsel %vm544, %v514, -inf
          %570 = vmax.xlane.f32.xlu0 %v569
          %v571 = vpop.xlane.xlu0 %570
          %v572 = vsel %vm544, %v517, -inf
          %573 = vmax.xlane.f32.xlu0 %v572
          %v574 = vpop.xlane.xlu0 %573
          %v575 = vsel %vm544, %v522, -inf
          %576 = vmax.xlane.f32.xlu0 %v575
          %v577 = vpop.xlane.xlu0 %576
          %v578 = vsel %vm544, %v525, -inf
          %579 = vmax.xlane.f32.xlu0 %v578
          %v580 = vpop.xlane.xlu0 %579
          %v581 = vsel %vm544, %v530, -inf
          %582 = vmax.xlane.f32.xlu0 %v581
          %v583 = vpop.xlane.xlu0 %582
          %v584 = vsel %vm544, %v533, -inf
          %585 = vmax.xlane.f32.xlu0 %v584
          %v586 = vpop.xlane.xlu0 %585
          %v587 = vsel %vm544, %v538, -inf
          %588 = vmax.xlane.f32.xlu0 %v587
          %v589 = vpop.xlane.xlu0 %588
          %v590 = vsel %vm544, %v541, -inf
          %591 = vmax.xlane.f32.xlu0 %v590
          %v592 = vpop.xlane.xlu0 %591
          %v593 = vsub.f32 %v482, %v547
          %v594 = vsub.f32 %v485, %v550
          %v595 = vsub.f32 %v490, %v553
          %v596 = vsub.f32 %v493, %v556
          %v597 = vsub.f32 %v498, %v559
          %v598 = vsub.f32 %v501, %v562
          %v599 = vsub.f32 %v506, %v565
          %v600 = vsub.f32 %v509, %v568
          %v601 = vsub.f32 %v514, %v571
          %v602 = vsub.f32 %v517, %v574
          %v603 = vsub.f32 %v522, %v577
          %v604 = vsub.f32 %v525, %v580
          %v605 = vsub.f32 %v530, %v583
          %v606 = vsub.f32 %v533, %v586
          %v607 = vsub.f32 %v538, %v589
          %v608 = vsub.f32 %v541, %v592
          %v609 = vmul.f32 %v593, 1.442695
          %v610 = vpow.pop %v609
          %v611 = vmul.f32 %v594, 1.442695
          %v612 = vpow.pop %v611
          %v613 = vmul.f32 %v595, 1.442695
          %v614 = vpow.pop %v613
          %v615 = vmul.f32 %v596, 1.442695
          %v616 = vpow.pop %v615
          %v617 = vmul.f32 %v597, 1.442695
          %v618 = vpow.pop %v617
          %v619 = vmul.f32 %v598, 1.442695
          %v620 = vpow.pop %v619
          %v621 = vmul.f32 %v599, 1.442695
          %v622 = vpow.pop %v621
          %v623 = vmul.f32 %v600, 1.442695
          %v624 = vpow.pop %v623
          %v625 = vmul.f32 %v601, 1.442695
          %v626 = vpow.pop %v625
          %v627 = vmul.f32 %v602, 1.442695
          %v628 = vpow.pop %v627
          %v629 = vmul.f32 %v603, 1.442695
          %v630 = vpow.pop %v629
          %v631 = vmul.f32 %v604, 1.442695
          %v632 = vpow.pop %v631
          %v633 = vmul.f32 %v605, 1.442695
          %v634 = vpow.pop %v633
          %v635 = vmul.f32 %v606, 1.442695
          %v636 = vpow.pop %v635
          %v637 = vmul.f32 %v607, 1.442695
          %v638 = vpow.pop %v637
          %v639 = vmul.f32 %v608, 1.442695
          %v640 = vpow.pop %v639
          %v641 = vmul.f32 %v610, 0.5
          %v642 = vmul.f32 %v612, 0.5
          %v643 = vmul.f32 %v614, 0.5
          %v644 = vmul.f32 %v616, 0.5
          %v645 = vmul.f32 %v618, 0.5
          %v646 = vmul.f32 %v620, 0.5
          %v647 = vmul.f32 %v622, 0.5
          %v648 = vmul.f32 %v624, 0.5
          %v649 = vmul.f32 %v626, 0.5
          %v650 = vmul.f32 %v628, 0.5
          %v651 = vmul.f32 %v630, 0.5
          %v652 = vmul.f32 %v632, 0.5
          %v653 = vmul.f32 %v634, 0.5
          %v654 = vmul.f32 %v636, 0.5
          %v655 = vmul.f32 %v638, 0.5
          %v656 = vmul.f32 %v640, 0.5
          %v657 = vsel %vm544, %v610, 0.0
          %658 = vadd.xlane.f32.xlu0 %v657
          %v659 = vpop.xlane.xlu0 %658
          %v660 = vsel %vm544, %v612, 0.0
          %661 = vadd.xlane.f32.xlu0 %v660
          %v662 = vpop.xlane.xlu0 %661
          %v663 = vsel %vm544, %v614, 0.0
          %664 = vadd.xlane.f32.xlu0 %v663
          %v665 = vpop.xlane.xlu0 %664
          %v666 = vsel %vm544, %v616, 0.0
          %667 = vadd.xlane.f32.xlu0 %v666
          %v668 = vpop.xlane.xlu0 %667
          %v669 = vsel %vm544, %v618, 0.0
          %670 = vadd.xlane.f32.xlu0 %v669
          %v671 = vpop.xlane.xlu0 %670
          %v672 = vsel %vm544, %v620, 0.0
          %673 = vadd.xlane.f32.xlu0 %v672
          %v674 = vpop.xlane.xlu0 %673
          %v675 = vsel %vm544, %v622, 0.0
          %676 = vadd.xlane.f32.xlu0 %v675
          %v677 = vpop.xlane.xlu0 %676
          %v678 = vsel %vm544, %v624, 0.0
          %679 = vadd.xlane.f32.xlu0 %v678
          %v680 = vpop.xlane.xlu0 %679
          %v681 = vsel %vm544, %v626, 0.0
          %682 = vadd.xlane.f32.xlu0 %v681
          %v683 = vpop.xlane.xlu0 %682
          %v684 = vsel %vm544, %v628, 0.0
          %685 = vadd.xlane.f32.xlu0 %v684
          %v686 = vpop.xlane.xlu0 %685
          %v687 = vsel %vm544, %v630, 0.0
          %688 = vadd.xlane.f32.xlu0 %v687
          %v689 = vpop.xlane.xlu0 %688
          %v690 = vsel %vm544, %v632, 0.0
          %691 = vadd.xlane.f32.xlu0 %v690
          %v692 = vpop.xlane.xlu0 %691
          %v693 = vsel %vm544, %v634, 0.0
          %694 = vadd.xlane.f32.xlu0 %v693
          %v695 = vpop.xlane.xlu0 %694
          %v696 = vsel %vm544, %v636, 0.0
          %697 = vadd.xlane.f32.xlu0 %v696
          %v698 = vpop.xlane.xlu0 %697
          %v699 = vsel %vm544, %v638, 0.0
          %700 = vadd.xlane.f32.xlu0 %v699
          %v701 = vpop.xlane.xlu0 %700
          %v702 = vsel %vm544, %v640, 0.0
          %703 = vadd.xlane.f32.xlu0 %v702
          %v704 = vpop.xlane.xlu0 %703
          %v705 = vrcp.pop %v659
          %v706 = vmul.f32 %v641, %v705
          %v707 = vrcp.pop %v662
          %v708 = vmul.f32 %v642, %v707
          %v709 = vrcp.pop %v665
          %v710 = vmul.f32 %v643, %v709
          %v711 = vrcp.pop %v668
          %v712 = vmul.f32 %v644, %v711
          %v713 = vrcp.pop %v671
          %v714 = vmul.f32 %v645, %v713
          %v715 = vrcp.pop %v674
          %v716 = vmul.f32 %v646, %v715
          %v717 = vrcp.pop %v677
          %v718 = vmul.f32 %v647, %v717
          %v719 = vrcp.pop %v680
          %v720 = vmul.f32 %v648, %v719
          %v721 = vrcp.pop %v683
          %v722 = vmul.f32 %v649, %v721
          %v723 = vrcp.pop %v686
          %v724 = vmul.f32 %v650, %v723
          %v725 = vrcp.pop %v689
          %v726 = vmul.f32 %v651, %v725
          %v727 = vrcp.pop %v692
          %v728 = vmul.f32 %v652, %v727
          %v729 = vrcp.pop %v695
          %v730 = vmul.f32 %v653, %v729
          %v731 = vrcp.pop %v698
          %v732 = vmul.f32 %v654, %v731
          %v733 = vrcp.pop %v701
          %v734 = vmul.f32 %v655, %v733
          %v735 = vrcp.pop %v704
          %v736 = vmul.f32 %v656, %v735
          %737 = vst.msk [vmem:[#allocation3] sm:$0xff] %vm544, %v706
          %738 = vst.msk [vmem:[#allocation3 + $0x8] sm:$0xff] %vm544, %v708
          %739 = vst.msk [vmem:[#allocation3 + $0x10] sm:$0xff] %vm544, %v710
          %740 = vst.msk [vmem:[#allocation3 + $0x18] sm:$0xff] %vm544, %v712
          %741 = vst.msk [vmem:[#allocation3 + $0x20] sm:$0xff] %vm544, %v714
          %742 = vst.msk [vmem:[#allocation3 + $0x28] sm:$0xff] %vm544, %v716
          %743 = vst.msk [vmem:[#allocation3 + $0x30] sm:$0xff] %vm544, %v718
          %744 = vst.msk [vmem:[#allocation3 + $0x38] sm:$0xff] %vm544, %v720
          %745 = vst.msk [vmem:[#allocation3 + $0x40] sm:$0xff] %vm544, %v722
          %746 = vst.msk [vmem:[#allocation3 + $0x48] sm:$0xff] %vm544, %v724
          %747 = vst.msk [vmem:[#allocation3 + $0x50] sm:$0xff] %vm544, %v726
          %748 = vst.msk [vmem:[#allocation3 + $0x58] sm:$0xff] %vm544, %v728
          %749 = vst.msk [vmem:[#allocation3 + $0x60] sm:$0xff] %vm544, %v730
          %750 = vst.msk [vmem:[#allocation3 + $0x68] sm:$0xff] %vm544, %v732
          %751 = vst.msk [vmem:[#allocation3 + $0x70] sm:$0xff] %vm544, %v734
          %752 = vst.msk [vmem:[#allocation3 + $0x78] sm:$0xff] %vm544, %v736
          %753 = vst [vmem:[#allocation2] sm:$0xff] 0.0
          %754 = vst [vmem:[#allocation2 + $0x8] sm:$0xff] 0.0
          %755 = vst [vmem:[#allocation2 + $0x10] sm:$0xff] 0.0
          %756 = vst [vmem:[#allocation2 + $0x18] sm:$0xff] 0.0
          %757 = vst [vmem:[#allocation2 + $0x20] sm:$0xff] 0.0
          %758 = vst [vmem:[#allocation2 + $0x28] sm:$0xff] 0.0
          %759 = vst [vmem:[#allocation2 + $0x30] sm:$0xff] 0.0
          %760 = vst [vmem:[#allocation2 + $0x38] sm:$0xff] 0.0
          %761 = vst [vmem:[#allocation2 + $0x40] sm:$0xff] 0.0
          %762 = vst [vmem:[#allocation2 + $0x48] sm:$0xff] 0.0
          %763 = vst [vmem:[#allocation2 + $0x50] sm:$0xff] 0.0
          %764 = vst [vmem:[#allocation2 + $0x58] sm:$0xff] 0.0
          %765 = vst [vmem:[#allocation2 + $0x60] sm:$0xff] 0.0
          %766 = vst [vmem:[#allocation2 + $0x68] sm:$0xff] 0.0
          %767 = vst [vmem:[#allocation2 + $0x70] sm:$0xff] 0.0
          %768 = vst [vmem:[#allocation2 + $0x78] sm:$0xff] 0.0
        $region48: #{moe_forward.1} parent=39 // pred_fallthru
          _
        %v769 = vld [vmem:[%s300] sm:$0xf]
        %v770 = vld [vmem:[%s300 + $0x4] sm:$0xf]
        %v771 = vld [vmem:[%s300 + $0x8] sm:$0xf]
        %v772 = vld [vmem:[%s300 + $0xc] sm:$0xf]
        %v773 = vld [vmem:[%s300 + $0x10] sm:$0xf]
        %v774 = vld [vmem:[%s300 + $0x14] sm:$0xf]
        %v775 = vld [vmem:[%s300 + $0x18] sm:$0xf]
        %v776 = vld [vmem:[%s300 + $0x1c] sm:$0xf]
        %v777 = vld [vmem:[%s300 + $0x20] sm:$0xf]
        %v778 = vld [vmem:[%s300 + $0x24] sm:$0xf]
        %v779 = vld [vmem:[%s300 + $0x28] sm:$0xf]
        %v780 = vld [vmem:[%s300 + $0x2c] sm:$0xf]
        %v781 = vld [vmem:[%s300 + $0x30] sm:$0xf]
        %v782 = vld [vmem:[%s300 + $0x34] sm:$0xf]
        %v783 = vld [vmem:[%s300 + $0x38] sm:$0xf]
        %v784 = vld [vmem:[%s300 + $0x3c] sm:$0xf]
        %v785 = vld [vmem:[%s260] sm:$0xf]
        %v786 = vld [vmem:[%s260 + $0x4] sm:$0xf]
        %v787 = vld [vmem:[%s260 + $0x8] sm:$0xf]
        %v788 = vld [vmem:[%s260 + $0xc] sm:$0xf]
        %v789 = vld [vmem:[%s260 + $0x10] sm:$0xf]
        %v790 = vld [vmem:[%s260 + $0x14] sm:$0xf]
        %v791 = vld [vmem:[%s260 + $0x18] sm:$0xf]
        %v792 = vld [vmem:[%s260 + $0x1c] sm:$0xf]
        %v793 = vld [vmem:[%s260 + $0x20] sm:$0xf]
        %v794 = vld [vmem:[%s260 + $0x24] sm:$0xf]
        %v795 = vld [vmem:[%s260 + $0x28] sm:$0xf]
        %v796 = vld [vmem:[%s260 + $0x2c] sm:$0xf]
        %v797 = vld [vmem:[%s260 + $0x30] sm:$0xf]
        %v798 = vld [vmem:[%s260 + $0x34] sm:$0xf]
        %v799 = vld [vmem:[%s260 + $0x38] sm:$0xf]
        %v800 = vld [vmem:[%s260 + $0x3c] sm:$0xf]
        %s801 = scalar_lea.vmem %s305, %s29
        %v802 = vld [vmem:[%s801] sm:$0x1]
        %v803 = vlaneseq
        %v804 = vshrl.u32 %v803, 7
        %v805 = vsub.s32 0, %v804
        %v806 = vrot.slane %v802, %v805
        %v823 = vunpack.c.l.b16 %v769
        %v824 = vunpack.c.l.b16 %v770
        %v825 = vunpack.c.l.b16 %v771
        %v826 = vunpack.c.l.b16 %v772
        %v827 = vunpack.c.l.b16 %v773
        %v828 = vunpack.c.l.b16 %v774
        %v829 = vunpack.c.l.b16 %v775
        %v830 = vunpack.c.l.b16 %v776
        %v831 = vunpack.c.l.b16 %v777
        %v832 = vunpack.c.l.b16 %v778
        %v833 = vunpack.c.l.b16 %v779
        %v834 = vunpack.c.l.b16 %v780
        %v835 = vunpack.c.l.b16 %v781
        %v836 = vunpack.c.l.b16 %v782
        %v837 = vunpack.c.l.b16 %v783
        %v838 = vunpack.c.l.b16 %v784
        %v839 = vpack.c.b16 %v824, %v823
        %v840 = vpack.c.b16 %v826, %v825
        %v841 = vpack.c.b16 %v828, %v827
        %v842 = vpack.c.b16 %v830, %v829
        %v843 = vpack.c.b16 %v832, %v831
        %v844 = vpack.c.b16 %v834, %v833
        %v845 = vpack.c.b16 %v836, %v835
        %v846 = vpack.c.b16 %v838, %v837
        %v871 = vunpack.c.l.b16 %v785
        %v872 = vunpack.c.l.b16 %v786
        %v873 = vunpack.c.l.b16 %v787
        %v874 = vunpack.c.l.b16 %v788
        %v875 = vunpack.c.l.b16 %v789
        %v876 = vunpack.c.l.b16 %v790
        %v877 = vunpack.c.l.b16 %v791
        %v878 = vunpack.c.l.b16 %v792
        %v879 = vunpack.c.l.b16 %v793
        %v880 = vunpack.c.l.b16 %v794
        %v881 = vunpack.c.l.b16 %v795
        %v882 = vunpack.c.l.b16 %v796
        %v883 = vunpack.c.l.b16 %v797
        %v884 = vunpack.c.l.b16 %v798
        %v885 = vunpack.c.l.b16 %v799
        %v886 = vunpack.c.l.b16 %v800
        %v887 = vpack.c.b16 %v872, %v871
        %v888 = vpack.c.b16 %v874, %v873
        %v889 = vpack.c.b16 %v876, %v875
        %v890 = vpack.c.b16 %v878, %v877
        %v891 = vpack.c.b16 %v880, %v879
        %v892 = vpack.c.b16 %v882, %v881
        %v893 = vpack.c.b16 %v884, %v883
        %v894 = vpack.c.b16 %v886, %v885
        %903 = vmatprep.subr.bf16.mxu0 0
        %904 = vmatpush1.bf16.msra.mxu0 %v887
        %905 = vmatprep.subr.bf16.mxu0 0
        %906 = vmatpush1.bf16.msra.mxu0 %v888
        %907 = vmatprep.subr.bf16.mxu0 0
        %908 = vmatpush1.bf16.msra.mxu0 %v889
        %909 = vmatprep.subr.bf16.mxu0 0
        %910 = vmatpush1.bf16.msra.mxu0 %v890
        %911 = vmatprep.subr.bf16.mxu0 0
        %912 = vmatpush1.bf16.msra.mxu0 %v891
        %913 = vmatprep.subr.bf16.mxu0 0
        %914 = vmatpush1.bf16.msra.mxu0 %v892
        %915 = vmatprep.subr.bf16.mxu0 0
        %916 = vmatpush1.bf16.msra.mxu0 %v893
        %917 = vmatprep.subr.bf16.mxu0 0
        %918 = vmatpush1.bf16.msra.mxu0 %v894
        %919 = vmatprep.subr.bf16.mxu0 0
        %920 = vmatpush1.bf16.msra.mxu0 0
        %921 = vmatprep.subr.bf16.mxu0 0
        %922 = vmatpush1.bf16.msra.mxu0 0
        %923 = vmatprep.subr.bf16.mxu0 0
        %924 = vmatpush1.bf16.msra.mxu0 0
        %925 = vmatprep.subr.bf16.mxu0 0
        %926 = vmatpush1.bf16.msra.mxu0 0
        %927 = vmatprep.subr.bf16.mxu0 0
        %928 = vmatpush1.bf16.msra.mxu0 0
        %929 = vmatprep.subr.bf16.mxu0 0
        %930 = vmatpush1.bf16.msra.mxu0 0
        %931 = vmatprep.subr.bf16.mxu0 0
        %932 = vmatpush1.bf16.msra.mxu0 0
        %933 = vmatprep.subr.bf16.mxu0 0
        %934 = vmatpush1.bf16.msra.mxu0 0
        %935 = vmatprep.mubr.bf16.mxu0 0
        %936 = vmatmul.mubr.bf16.gmra.mrb[0].mxu0 %v839
        %v937 = vpop.f32.mrb[0].mxu0
        %v938 = vadd.f32 %v806, %v937
        %v939 = vpop.f32.mrb[0].mxu0
        %v940 = vpop.f32.mrb[0].mxu0
        %v941 = vadd.f32 %v806, %v940
        %v942 = vpop.f32.mrb[0].mxu0
        %943 = vmatprep.mubr.bf16.mxu0 0
        %944 = vmatmul.mubr.bf16.gmra.mrb[0].mxu0 %v840
        %v945 = vpop.f32.mrb[0].mxu0
        %v946 = vadd.f32 %v806, %v945
        %v947 = vpop.f32.mrb[0].mxu0
        %v948 = vpop.f32.mrb[0].mxu0
        %v949 = vadd.f32 %v806, %v948
        %v950 = vpop.f32.mrb[0].mxu0
        %951 = vmatprep.mubr.bf16.mxu0 0
        %952 = vmatmul.mubr.bf16.gmra.mrb[0].mxu0 %v841
        %v953 = vpop.f32.mrb[0].mxu0
        %v954 = vadd.f32 %v806, %v953
        %v955 = vpop.f32.mrb[0].mxu0
        %v956 = vpop.f32.mrb[0].mxu0
        %v957 = vadd.f32 %v806, %v956
        %v958 = vpop.f32.mrb[0].mxu0
        %959 = vmatprep.mubr.bf16.mxu0 0
        %960 = vmatmul.mubr.bf16.gmra.mrb[0].mxu0 %v842
        %v961 = vpop.f32.mrb[0].mxu0
        %v962 = vadd.f32 %v806, %v961
        %v963 = vpop.f32.mrb[0].mxu0
        %v964 = vpop.f32.mrb[0].mxu0
        %v965 = vadd.f32 %v806, %v964
        %v966 = vpop.f32.mrb[0].mxu0
        %967 = vmatprep.mubr.bf16.mxu0 0
        %968 = vmatmul.mubr.bf16.gmra.mrb[0].mxu0 %v843
        %v969 = vpop.f32.mrb[0].mxu0
        %v970 = vadd.f32 %v806, %v969
        %v971 = vpop.f32.mrb[0].mxu0
        %v972 = vpop.f32.mrb[0].mxu0
        %v973 = vadd.f32 %v806, %v972
        %v974 = vpop.f32.mrb[0].mxu0
        %975 = vmatprep.mubr.bf16.mxu0 0
        %976 = vmatmul.mubr.bf16.gmra.mrb[0].mxu0 %v844
        %v977 = vpop.f32.mrb[0].mxu0
        %v978 = vadd.f32 %v806, %v977
        %v979 = vpop.f32.mrb[0].mxu0
        %v980 = vpop.f32.mrb[0].mxu0
        %v981 = vadd.f32 %v806, %v980
        %v982 = vpop.f32.mrb[0].mxu0
        %983 = vmatprep.mubr.bf16.mxu0 0
        %984 = vmatmul.mubr.bf16.gmra.mrb[0].mxu0 %v845
        %v985 = vpop.f32.mrb[0].mxu0
        %v986 = vadd.f32 %v806, %v985
        %v987 = vpop.f32.mrb[0].mxu0
        %v988 = vpop.f32.mrb[0].mxu0
        %v989 = vadd.f32 %v806, %v988
        %v990 = vpop.f32.mrb[0].mxu0
        %991 = vmatprep.mubr.bf16.mxu0 0
        %992 = vmatmul.mubr.bf16.gmra.mrb[0].mxu0 %v846
        %v993 = vpop.f32.mrb[0].mxu0
        %v994 = vadd.f32 %v806, %v993
        %v995 = vpop.f32.mrb[0].mxu0
        %v996 = vpop.f32.mrb[0].mxu0
        %v997 = vadd.f32 %v806, %v996
        %v998 = vpop.f32.mrb[0].mxu0
        %999 = vdwg.mxu0
        %v1000 = vmul.f32 %v938, 0.70710677
        %v1001 = vmul.f32 %v941, 0.70710677
        %v1002 = vmul.f32 %v946, 0.70710677
        %v1003 = vmul.f32 %v949, 0.70710677
        %v1004 = vmul.f32 %v954, 0.70710677
        %v1005 = vmul.f32 %v957, 0.70710677
        %v1006 = vmul.f32 %v962, 0.70710677
        %v1007 = vmul.f32 %v965, 0.70710677
        %v1008 = vmul.f32 %v970, 0.70710677
        %v1009 = vmul.f32 %v973, 0.70710677
        %v1010 = vmul.f32 %v978, 0.70710677
        %v1011 = vmul.f32 %v981, 0.70710677
        %v1012 = vmul.f32 %v986, 0.70710677
        %v1013 = vmul.f32 %v989, 0.70710677
        %v1014 = vmul.f32 %v994, 0.70710677
        %v1015 = vmul.f32 %v997, 0.70710677
        %v1016 = verf.f32.pop %v1000
        %v1017 = verf.f32.pop %v1001
        %v1018 = verf.f32.pop %v1002
        %v1019 = verf.f32.pop %v1003
        %v1020 = verf.f32.pop %v1004
        %v1021 = verf.f32.pop %v1005
        %v1022 = verf.f32.pop %v1006
        %v1023 = verf.f32.pop %v1007
        %v1024 = verf.f32.pop %v1008
        %v1025 = verf.f32.pop %v1009
        %v1026 = verf.f32.pop %v1010
        %v1027 = verf.f32.pop %v1011
        %v1028 = verf.f32.pop %v1012
        %v1029 = verf.f32.pop %v1013
        %v1030 = verf.f32.pop %v1014
        %v1031 = verf.f32.pop %v1015
        %v1032 = vadd.f32 %v1016, 1.0
        %v1033 = vadd.f32 %v1017, 1.0
        %v1034 = vadd.f32 %v1018, 1.0
        %v1035 = vadd.f32 %v1019, 1.0
        %v1036 = vadd.f32 %v1020, 1.0
        %v1037 = vadd.f32 %v1021, 1.0
        %v1038 = vadd.f32 %v1022, 1.0
        %v1039 = vadd.f32 %v1023, 1.0
        %v1040 = vadd.f32 %v1024, 1.0
        %v1041 = vadd.f32 %v1025, 1.0
        %v1042 = vadd.f32 %v1026, 1.0
        %v1043 = vadd.f32 %v1027, 1.0
        %v1044 = vadd.f32 %v1028, 1.0
        %v1045 = vadd.f32 %v1029, 1.0
        %v1046 = vadd.f32 %v1030, 1.0
        %v1047 = vadd.f32 %v1031, 1.0
        %v1048 = vmul.f32 %v938, %v1032
        %v1049 = vmul.f32 %v941, %v1033
        %v1050 = vmul.f32 %v946, %v1034
        %v1051 = vmul.f32 %v949, %v1035
        %v1052 = vmul.f32 %v954, %v1036
        %v1053 = vmul.f32 %v957, %v1037
        %v1054 = vmul.f32 %v962, %v1038
        %v1055 = vmul.f32 %v965, %v1039
        %v1056 = vmul.f32 %v970, %v1040
        %v1057 = vmul.f32 %v973, %v1041
        %v1058 = vmul.f32 %v978, %v1042
        %v1059 = vmul.f32 %v981, %v1043
        %v1060 = vmul.f32 %v986, %v1044
        %v1061 = vmul.f32 %v989, %v1045
        %v1062 = vmul.f32 %v994, %v1046
        %v1063 = vmul.f32 %v997, %v1047
        %v1064 = vlaneseq
        %v1065 = vand.u32 %v1064, 127
        %v1066 = vstv %s29
        %vm1067 = vcmp.eq.s32.totalorder %v1065, %v1066
        %v1068 = vld [vmem:[#allocation3] sm:$0xff]
        %v1069 = vld [vmem:[#allocation3 + $0x8] sm:$0xff]
        %v1070 = vld [vmem:[#allocation3 + $0x10] sm:$0xff]
        %v1071 = vld [vmem:[#allocation3 + $0x18] sm:$0xff]
        %v1072 = vld [vmem:[#allocation3 + $0x20] sm:$0xff]
        %v1073 = vld [vmem:[#allocation3 + $0x28] sm:$0xff]
        %v1074 = vld [vmem:[#allocation3 + $0x30] sm:$0xff]
        %v1075 = vld [vmem:[#allocation3 + $0x38] sm:$0xff]
        %v1076 = vld [vmem:[#allocation3 + $0x40] sm:$0xff]
        %v1077 = vld [vmem:[#allocation3 + $0x48] sm:$0xff]
        %v1078 = vld [vmem:[#allocation3 + $0x50] sm:$0xff]
        %v1079 = vld [vmem:[#allocation3 + $0x58] sm:$0xff]
        %v1080 = vld [vmem:[#allocation3 + $0x60] sm:$0xff]
        %v1081 = vld [vmem:[#allocation3 + $0x68] sm:$0xff]
        %v1082 = vld [vmem:[#allocation3 + $0x70] sm:$0xff]
        %v1083 = vld [vmem:[#allocation3 + $0x78] sm:$0xff]
        %v1084 = vsel %vm1067, %v1068, 0.0
        %v1085 = vsel %vm1067, %v1069, 0.0
        %v1086 = vsel %vm1067, %v1070, 0.0
        %v1087 = vsel %vm1067, %v1071, 0.0
        %v1088 = vsel %vm1067, %v1072, 0.0
        %v1089 = vsel %vm1067, %v1073, 0.0
        %v1090 = vsel %vm1067, %v1074, 0.0
        %v1091 = vsel %vm1067, %v1075, 0.0
        %v1092 = vsel %vm1067, %v1076, 0.0
        %v1093 = vsel %vm1067, %v1077, 0.0
        %v1094 = vsel %vm1067, %v1078, 0.0
        %v1095 = vsel %vm1067, %v1079, 0.0
        %v1096 = vsel %vm1067, %v1080, 0.0
        %v1097 = vsel %vm1067, %v1081, 0.0
        %v1098 = vsel %vm1067, %v1082, 0.0
        %v1099 = vsel %vm1067, %v1083, 0.0
        %vm1100 = vcmask 31744
        %v1101 = vsel %vm1100, %v1084, 0.0
        %1102 = vadd.xlane.f32.xlu0 %v1101
        %v1103 = vpop.xlane.xlu0 %1102
        %v1104 = vsel %vm1100, %v1085, 0.0
        %1105 = vadd.xlane.f32.xlu0 %v1104
        %v1106 = vpop.xlane.xlu0 %1105
        %v1107 = vsel %vm1100, %v1086, 0.0
        %1108 = vadd.xlane.f32.xlu0 %v1107
        %v1109 = vpop.xlane.xlu0 %1108
        %v1110 = vsel %vm1100, %v1087, 0.0
        %1111 = vadd.xlane.f32.xlu0 %v1110
        %v1112 = vpop.xlane.xlu0 %1111
        %v1113 = vsel %vm1100, %v1088, 0.0
        %1114 = vadd.xlane.f32.xlu0 %v1113
        %v1115 = vpop.xlane.xlu0 %1114
        %v1116 = vsel %vm1100, %v1089, 0.0
        %1117 = vadd.xlane.f32.xlu0 %v1116
        %v1118 = vpop.xlane.xlu0 %1117
        %v1119 = vsel %vm1100, %v1090, 0.0
        %1120 = vadd.xlane.f32.xlu0 %v1119
        %v1121 = vpop.xlane.xlu0 %1120
        %v1122 = vsel %vm1100, %v1091, 0.0
        %1123 = vadd.xlane.f32.xlu0 %v1122
        %v1124 = vpop.xlane.xlu0 %1123
        %v1125 = vsel %vm1100, %v1092, 0.0
        %1126 = vadd.xlane.f32.xlu0 %v1125
        %v1127 = vpop.xlane.xlu0 %1126
        %v1128 = vsel %vm1100, %v1093, 0.0
        %1129 = vadd.xlane.f32.xlu0 %v1128
        %v1130 = vpop.xlane.xlu0 %1129
        %v1131 = vsel %vm1100, %v1094, 0.0
        %1132 = vadd.xlane.f32.xlu0 %v1131
        %v1133 = vpop.xlane.xlu0 %1132
        %v1134 = vsel %vm1100, %v1095, 0.0
        %1135 = vadd.xlane.f32.xlu0 %v1134
        %v1136 = vpop.xlane.xlu0 %1135
        %v1137 = vsel %vm1100, %v1096, 0.0
        %1138 = vadd.xlane.f32.xlu0 %v1137
        %v1139 = vpop.xlane.xlu0 %1138
        %v1140 = vsel %vm1100, %v1097, 0.0
        %1141 = vadd.xlane.f32.xlu0 %v1140
        %v1142 = vpop.xlane.xlu0 %1141
        %v1143 = vsel %vm1100, %v1098, 0.0
        %1144 = vadd.xlane.f32.xlu0 %v1143
        %v1145 = vpop.xlane.xlu0 %1144
        %v1146 = vsel %vm1100, %v1099, 0.0
        %1147 = vadd.xlane.f32.xlu0 %v1146
        %v1148 = vpop.xlane.xlu0 %1147
        %v1149 = vld [vmem:[#allocation2] sm:$0xff]
        %v1150 = vld [vmem:[#allocation2 + $0x8] sm:$0xff]
        %v1151 = vld [vmem:[#allocation2 + $0x10] sm:$0xff]
        %v1152 = vld [vmem:[#allocation2 + $0x18] sm:$0xff]
        %v1153 = vld [vmem:[#allocation2 + $0x20] sm:$0xff]
        %v1154 = vld [vmem:[#allocation2 + $0x28] sm:$0xff]
        %v1155 = vld [vmem:[#allocation2 + $0x30] sm:$0xff]
        %v1156 = vld [vmem:[#allocation2 + $0x38] sm:$0xff]
        %v1157 = vld [vmem:[#allocation2 + $0x40] sm:$0xff]
        %v1158 = vld [vmem:[#allocation2 + $0x48] sm:$0xff]
        %v1159 = vld [vmem:[#allocation2 + $0x50] sm:$0xff]
        %v1160 = vld [vmem:[#allocation2 + $0x58] sm:$0xff]
        %v1161 = vld [vmem:[#allocation2 + $0x60] sm:$0xff]
        %v1162 = vld [vmem:[#allocation2 + $0x68] sm:$0xff]
        %v1163 = vld [vmem:[#allocation2 + $0x70] sm:$0xff]
        %v1164 = vld [vmem:[#allocation2 + $0x78] sm:$0xff]
        %v1165 = vmul.f32 %v1103, %v1048
        %v1166 = vmul.f32 %v1106, %v1049
        %v1167 = vmul.f32 %v1109, %v1050
        %v1168 = vmul.f32 %v1112, %v1051
        %v1169 = vmul.f32 %v1115, %v1052
        %v1170 = vmul.f32 %v1118, %v1053
        %v1171 = vmul.f32 %v1121, %v1054
        %v1172 = vmul.f32 %v1124, %v1055
        %v1173 = vmul.f32 %v1127, %v1056
        %v1174 = vmul.f32 %v1130, %v1057
        %v1175 = vmul.f32 %v1133, %v1058
        %v1176 = vmul.f32 %v1136, %v1059
        %v1177 = vmul.f32 %v1139, %v1060
        %v1178 = vmul.f32 %v1142, %v1061
        %v1179 = vmul.f32 %v1145, %v1062
        %v1180 = vmul.f32 %v1148, %v1063
        %v1181 = vadd.f32 %v1149, %v1165
        %v1182 = vadd.f32 %v1150, %v1166
        %v1183 = vadd.f32 %v1151, %v1167
        %v1184 = vadd.f32 %v1152, %v1168
        %v1185 = vadd.f32 %v1153, %v1169
        %v1186 = vadd.f32 %v1154, %v1170
        %v1187 = vadd.f32 %v1155, %v1171
        %v1188 = vadd.f32 %v1156, %v1172
        %v1189 = vadd.f32 %v1157, %v1173
        %v1190 = vadd.f32 %v1158, %v1174
        %v1191 = vadd.f32 %v1159, %v1175
        %v1192 = vadd.f32 %v1160, %v1176
        %v1193 = vadd.f32 %v1161, %v1177
        %v1194 = vadd.f32 %v1162, %v1178
        %v1195 = vadd.f32 %v1163, %v1179
        %v1196 = vadd.f32 %v1164, %v1180
        %1197 = vst [vmem:[#allocation2] sm:$0xff] %v1181
        %1198 = vst [vmem:[#allocation2 + $0x8] sm:$0xff] %v1182
        %1199 = vst [vmem:[#allocation2 + $0x10] sm:$0xff] %v1183
        %1200 = vst [vmem:[#allocation2 + $0x18] sm:$0xff] %v1184
        %1201 = vst [vmem:[#allocation2 + $0x20] sm:$0xff] %v1185
        %1202 = vst [vmem:[#allocation2 + $0x28] sm:$0xff] %v1186
        %1203 = vst [vmem:[#allocation2 + $0x30] sm:$0xff] %v1187
        %1204 = vst [vmem:[#allocation2 + $0x38] sm:$0xff] %v1188
        %1205 = vst [vmem:[#allocation2 + $0x40] sm:$0xff] %v1189
        %1206 = vst [vmem:[#allocation2 + $0x48] sm:$0xff] %v1190
        %1207 = vst [vmem:[#allocation2 + $0x50] sm:$0xff] %v1191
        %1208 = vst [vmem:[#allocation2 + $0x58] sm:$0xff] %v1192
        %1209 = vst [vmem:[#allocation2 + $0x60] sm:$0xff] %v1193
        %1210 = vst [vmem:[#allocation2 + $0x68] sm:$0xff] %v1194
        %1211 = vst [vmem:[#allocation2 + $0x70] sm:$0xff] %v1195
        %1212 = vst [vmem:[#allocation2 + $0x78] sm:$0xff] %v1196
        %p1213 = scmp.eq.s32.totalorder %s29, 3
        // Predicated region
        $region49: #{moe_forward.1} parent=39 // pred_check
          %p1214 = pneg %p1213
        $region50: #{moe_forward.1} parent=39 // pred_check_branch
          %1216 = sbr.rel (%p1214) target = $region52
        $region51: #{moe_forward.1} parent=39 // pred_region
          %v1217 = vld [vmem:[#allocation2] sm:$0xff]
          %v1218 = vld [vmem:[#allocation2 + $0x8] sm:$0xff]
          %v1219 = vld [vmem:[#allocation2 + $0x10] sm:$0xff]
          %v1220 = vld [vmem:[#allocation2 + $0x18] sm:$0xff]
          %v1221 = vld [vmem:[#allocation2 + $0x20] sm:$0xff]
          %v1222 = vld [vmem:[#allocation2 + $0x28] sm:$0xff]
          %v1223 = vld [vmem:[#allocation2 + $0x30] sm:$0xff]
          %v1224 = vld [vmem:[#allocation2 + $0x38] sm:$0xff]
          %v1225 = vld [vmem:[#allocation2 + $0x40] sm:$0xff]
          %v1226 = vld [vmem:[#allocation2 + $0x48] sm:$0xff]
          %v1227 = vld [vmem:[#allocation2 + $0x50] sm:$0xff]
          %v1228 = vld [vmem:[#allocation2 + $0x58] sm:$0xff]
          %v1229 = vld [vmem:[#allocation2 + $0x60] sm:$0xff]
          %v1230 = vld [vmem:[#allocation2 + $0x68] sm:$0xff]
          %v1231 = vld [vmem:[#allocation2 + $0x70] sm:$0xff]
          %v1232 = vld [vmem:[#allocation2 + $0x78] sm:$0xff]
          %1233 = vst [vmem:[%s295] sm:$0xff] %v1217
          %1234 = vst [vmem:[%s295 + $0x8] sm:$0xff] %v1218
          %1235 = vst [vmem:[%s295 + $0x10] sm:$0xff] %v1219
          %1236 = vst [vmem:[%s295 + $0x18] sm:$0xff] %v1220
          %1237 = vst [vmem:[%s295 + $0x20] sm:$0xff] %v1221
          %1238 = vst [vmem:[%s295 + $0x28] sm:$0xff] %v1222
          %1239 = vst [vmem:[%s295 + $0x30] sm:$0xff] %v1223
          %1240 = vst [vmem:[%s295 + $0x38] sm:$0xff] %v1224
          %1241 = vst [vmem:[%s295 + $0x40] sm:$0xff] %v1225
          %1242 = vst [vmem:[%s295 + $0x48] sm:$0xff] %v1226
          %1243 = vst [vmem:[%s295 + $0x50] sm:$0xff] %v1227
          %1244 = vst [vmem:[%s295 + $0x58] sm:$0xff] %v1228
          %1245 = vst [vmem:[%s295 + $0x60] sm:$0xff] %v1229
          %1246 = vst [vmem:[%s295 + $0x68] sm:$0xff] %v1230
          %1247 = vst [vmem:[%s295 + $0x70] sm:$0xff] %v1231
          %1248 = vst [vmem:[%s295 + $0x78] sm:$0xff] %v1232
        $region52: #{moe_forward.1} parent=39 // pred_fallthru
          _
        %s1249 = sand.u32 %s173, 1
        %s1250 = scalar_lea.sflag [#allocation6], %s1249
        %s1251 = sand.u32 %s173, 1
        %s1252 = smul.addr %s1251, 128
        %s1253 = scalar_lea.vmem [#allocation7], %s1252
        // Predicated region
        $region53: #{moe_forward.1} parent=39 // pred_check
          %p1254 = pneg %p183
        $region54: #{moe_forward.1} parent=39 // pred_check_branch
          %1256 = sbr.rel (%p1254) target = $region56
        $region55: #{moe_forward.1} parent=39 // pred_region
          %s1257 = smul.u32 16, %s27
          %s1259 = ssub.s32 2048, 2048
          %1260 = vsyncadd %s1250, %s1259
          %s1261 = smul.addr %s1257, 2
          %s1262 = sadd.s32 %s28, %s1261
          %s1263 = smul.addr %s1262, 128
          %s1264 = scalar_lea.hbm %s5, %s1263
          %s1265 = sshll.u32 %s1253, 4
          %s1266 = int_to_ptr.vmem [resolvable:$true] %s1265
          %1271 = dma.vmem_to_hbm [thread:$0]  %s1266, 2048, %s1264, %s1250, 128, 256, 8
        $region56: #{moe_forward.1} parent=39 // pred_fallthru
          _
      $region40: #{moe_forward.1} parent=5 // pred_fallthru
        _
      %p1272 = scmp.le.s32.totalorder 2, %s17
      // Predicated region
      $region57: #{moe_forward.1} parent=5 // pred_check
        %p1273 = pneg %p1272
      $region58: #{moe_forward.1} parent=5 // pred_check_branch
        %1275 = sbr.rel (%p1273) target = $region60
      $region59: #{moe_forward.1} parent=5 // pred_region
        %s1276 = ssub.s32 %s17, 2
        // Predicated region
        $region61: #{moe_forward.1} parent=59 // pred_check
          %p1277 = pneg %p189
        $region62: #{moe_forward.1} parent=59 // pred_check_branch
          %1279 = sbr.rel (%p1277) target = $region64
        $region63: #{moe_forward.1} parent=59 // pred_region
          %s1280 = sand.u32 %s174, 1
          %s1281 = scalar_lea.sflag [#allocation6], %s1280
          %s1282 = sand.u32 %s174, 1
          %s1283 = smul.addr %s1282, 128
          %s1284 = scalar_lea.vmem [#allocation7], %s1283
          %1285 = dma.done %s1281, 2048
        $region64: #{moe_forward.1} parent=59 // pred_fallthru
          _
      $region60: #{moe_forward.1} parent=5 // pred_fallthru
        _
    $region6: #{moe_forward.1} parent=1 // loop_footer
      %s21 = sadd.s32 1, %s17
    $region7: #{moe_forward.1} parent=1 // loop_footer_branch
      %16 = sbr.rel target = $region3
    $region8: #{moe_forward.1} parent=1 // loop_exit
      _
    %1286 = vsyncpa [#allocation5], 1
    %s1287 = scalar_lea.sflag [#allocation5], 1
    %1288 = vsyncpa %s1287, 1
    %1289 = vsyncpa [#allocation6], 1
    %s1290 = scalar_lea.sflag [#allocation6], 1
    %1291 = vsyncpa %s1290, 1

</llo_original>
